<compile_context>
chip_gen: v5e
topology: v5e:2x2
jax: 0.10.0
libtpu: 0.0.40
codegen_flags: <defaults>
</compile_context>

<pallas_src>
import functools

import jax
import jax.numpy as jnp
from jax.experimental import pallas as pl
from jax.experimental.pallas import tpu as pltpu


def _dice_kernel(pred_ref, targ_ref, inter_ref, psum_ref, tsum_ref, bce_ref,
                 *, total_cols, col_tile, need_mask):
    k = pl.program_id(1)  # column (reduction) axis, trailing grid dim

    @pl.when(k == 0)
    def _():
        inter_ref[...] = jnp.zeros_like(inter_ref)
        psum_ref[...] = jnp.zeros_like(psum_ref)
        tsum_ref[...] = jnp.zeros_like(tsum_ref)
        bce_ref[...] = jnp.zeros_like(bce_ref)

    x = pred_ref[...].astype(jnp.float32)   # logits,  (TR, CK)
    t = targ_ref[...].astype(jnp.float32)   # targets, (TR, CK)

    # Share exp(-|x|) between the sigmoid and the BCE softplus term:
    #   sigmoid(x) = 1/(1+e)   if x >= 0,   e/(1+e)   if x < 0
    #   BCE el     = max(x,0) - x*t + log1p(e)
    # -> 3 EUP pushes per element (exp, recip, log1p) instead of 4-5.
    e = jnp.exp(-jnp.abs(x))
    r = 1.0 / (1.0 + e)
    s = jnp.where(x >= 0.0, r, e * r)
    bce_el = jnp.maximum(x, 0.0) - x * t + jnp.log1p(e)

    if need_mask:
        # Tail tile: zero out out-of-range columns (robust to garbage reads).
        col = k * col_tile + jax.lax.broadcasted_iota(jnp.int32, x.shape, 1)
        valid = col < total_cols
        s = jnp.where(valid, s, 0.0)
        t = jnp.where(valid, t, 0.0)
        bce_el = jnp.where(valid, bce_el, 0.0)

    # Per-row (per n*c) lane reductions only; the global BCE mean and the dice
    # mean are finished in the wrapper.
    # (Optional further refinement: accumulate lane-dense (TR,128) partials on
    #  the VPU and cross-lane-reduce only on the last k step.)
    inter_ref[...] += jnp.sum(s * t, axis=-1, keepdims=True)
    psum_ref[...] += jnp.sum(s, axis=-1, keepdims=True)
    tsum_ref[...] += jnp.sum(t, axis=-1, keepdims=True)
    bce_ref[...] += jnp.sum(bce_el, axis=-1, keepdims=True)


def _pick_row_tile(rows):
    """Largest multiple of 8 that divides rows (capped); full extent fallback."""
    if rows % 8 != 0:
        return rows  # block dim == full array dim is always allowed
    cap = min(rows, 256)
    tr = 8
    for cand in range(8, cap + 1, 8):
        if rows % cand == 0:
            tr = cand
    return tr


def _pick_col_tile(cols, row_tile, itemsize):
    """Largest lane-aligned column tile fitting a conservative VMEM budget."""
    # 2 inputs x 2 pipeline buffers x row_tile x ck x itemsize <= budget.
    # 8 MiB of input buffering leaves ample headroom even for v7x (64 MiB
    # physical / 32 MiB default scoped VMEM).
    budget = 8 * 1024 * 1024
    cap = budget // (4 * row_tile * max(itemsize, 1))
    cap = max(128, (cap // 128) * 128)
    cap = min(cap, 4096)
    if cols <= 128:
        return cols, False                      # single full-extent tile
    ck = min(cap, (cols // 128) * 128)          # lane-aligned
    return ck, (cols % ck != 0)                 # mask only if tail is partial


@jax.jit
def dice_loss(pred, target):
    """Returns (loss, bce, dice_loss) exactly like the PyTorch module."""
    n, c, h, w = pred.shape
    rows = n * c
    cols = h * w
    pred2d = pred.reshape(rows, cols)      # native dtype, contiguous reshape
    targ2d = target.reshape(rows, cols)

    itemsize = max(pred2d.dtype.itemsize, targ2d.dtype.itemsize)
    tr = _pick_row_tile(rows)
    ck, need_mask = _pick_col_tile(cols, tr, itemsize)
    grid = (rows // tr, pl.cdiv(cols, ck))

    kernel = functools.partial(
        _dice_kernel, total_cols=cols, col_tile=ck, need_mask=need_mask)

    in_spec = pl.BlockSpec((tr, ck), lambda i, k: (i, k))
    row_out_spec = pl.BlockSpec((tr, 1), lambda i, k: (i, 0))

    inter, psum, tsum, bce_rows = pl.pallas_call(
        kernel,
        out_shape=(
            jax.ShapeDtypeStruct((rows, 1), jnp.float32),
            jax.ShapeDtypeStruct((rows, 1), jnp.float32),
            jax.ShapeDtypeStruct((rows, 1), jnp.float32),
            jax.ShapeDtypeStruct((rows, 1), jnp.float32),
        ),
        grid_spec=pltpu.PrefetchScalarGridSpec(
            num_scalar_prefetch=0,
            grid=grid,
            in_specs=[in_spec, in_spec],
            out_specs=[row_out_spec, row_out_spec, row_out_spec, row_out_spec],
        ),
        compiler_params=pltpu.CompilerParams(
            dimension_semantics=("parallel", "arbitrary"),
            vmem_limit_bytes=32 * 1024 * 1024,
        ),
    )(pred2d, targ2d)

    smooth = 1e-05
    bce = jnp.sum(bce_rows) / (rows * cols)                    # reduction='mean'
    dice = 2.0 * (inter + smooth) / (psum + tsum + smooth)     # (rows, 1)
    dice_loss_val = 1.0 - jnp.mean(dice)
    loss = bce + dice_loss_val
    return loss, bce, dice_loss_val


def _reference(pred, target):
    smooth = 1e-05
    x = pred.astype(jnp.float32)
    t = target.astype(jnp.float32)
    bce_el = jnp.maximum(x, 0.0) - x * t + jnp.log1p(jnp.exp(-jnp.abs(x)))
    bce = jnp.mean(bce_el)
    s = jax.nn.sigmoid(x)
    inter = jnp.sum(s * t, axis=(2, 3))
    union = jnp.sum(s, axis=(2, 3)) + jnp.sum(t, axis=(2, 3))
    dice = 2.0 * (inter + smooth) / (union + smooth)
    dl = 1.0 - jnp.mean(dice)
    return bce + dl, bce, dl


if __name__ == "__main__":
    key = jax.random.PRNGKey(0)
    k1, k2 = jax.random.split(key)
    N, C, H, W = 2, 4, 16, 16
    pred = jax.random.normal(k1, (N, C, H, W), dtype=jnp.float32)      # logits
    target = (jax.random.uniform(k2, (N, C, H, W)) > 0.5).astype(jnp.float32)

    loss, bce, dl = dice_loss(pred, target)
    jax.block_until_ready((loss, bce, dl))

    ref_loss, ref_bce, ref_dl = _reference(pred, target)
    assert jnp.allclose(loss, ref_loss, atol=1e-5, rtol=5e-5)
    assert jnp.allclose(bce, ref_bce, atol=1e-5, rtol=5e-5)
    assert jnp.allclose(dl, ref_dl, atol=1e-5, rtol=5e-5)

    print("KERNEL_OK")
</pallas_src>

<mosaic_0001>
module attributes {stable_mosaic.version = 11 : i64} {
  func.func @_dice_kernel(%arg0: i32, %arg1: i32, %arg2: memref<8x256xf32, #tpu.memory_space<vmem>>, %arg3: memref<8x256xf32, #tpu.memory_space<vmem>>, %arg4: memref<8x1xf32, #tpu.memory_space<vmem>>, %arg5: memref<8x1xf32, #tpu.memory_space<vmem>>, %arg6: memref<8x1xf32, #tpu.memory_space<vmem>>, %arg7: memref<8x1xf32, #tpu.memory_space<vmem>>) attributes {dimension_semantics = [#tpu.dimension_semantics<parallel>, #tpu.dimension_semantics<arbitrary>], iteration_bounds = array<i64: 1, 1>, scalar_prefetch = 0 : i64, scratch_operands = 0 : i64, tpu.core_type = #tpu.core_type<tc>, window_params = [{transform_indices = @transform_0, window_bounds = array<i64: 8, 256>}, {transform_indices = @transform_1, window_bounds = array<i64: 8, 256>}, {transform_indices = @transform_2, window_bounds = array<i64: 8, 1>}, {transform_indices = @transform_3, window_bounds = array<i64: 8, 1>}, {transform_indices = @transform_4, window_bounds = array<i64: 8, 1>}, {transform_indices = @transform_5, window_bounds = array<i64: 8, 1>}]} {
    %c0_i32 = arith.constant 0 : i32
    %0 = arith.cmpi eq, %arg1, %c0_i32 : i32
    %1 = arith.extui %0 : i1 to i32
    %c0_i32_0 = arith.constant 0 : i32
    %2 = arith.cmpi ne, %1, %c0_i32_0 : i32
    scf.if %2 {
      %cst_28 = arith.constant 0.000000e+00 : f32
      %44 = vector.broadcast %cst_28 : f32 to vector<8x1xf32>
      %c0_29 = arith.constant 0 : index
      %c0_30 = arith.constant 0 : index
      %45 = vector.load %arg4[%c0_29, %c0_30] : memref<8x1xf32, #tpu.memory_space<vmem>>, vector<8x1xf32>
      tpu.vector_store %arg4[%c0_29, %c0_30], %44 {strides = array<i32>} : memref<8x1xf32, #tpu.memory_space<vmem>>, vector<8x1xf32>,
      %cst_31 = arith.constant 0.000000e+00 : f32
      %46 = vector.broadcast %cst_31 : f32 to vector<8x1xf32>
      %c0_32 = arith.constant 0 : index
      %c0_33 = arith.constant 0 : index
      %47 = vector.load %arg5[%c0_32, %c0_33] : memref<8x1xf32, #tpu.memory_space<vmem>>, vector<8x1xf32>
      tpu.vector_store %arg5[%c0_32, %c0_33], %46 {strides = array<i32>} : memref<8x1xf32, #tpu.memory_space<vmem>>, vector<8x1xf32>,
      %cst_34 = arith.constant 0.000000e+00 : f32
      %48 = vector.broadcast %cst_34 : f32 to vector<8x1xf32>
      %c0_35 = arith.constant 0 : index
      %c0_36 = arith.constant 0 : index
      %49 = vector.load %arg6[%c0_35, %c0_36] : memref<8x1xf32, #tpu.memory_space<vmem>>, vector<8x1xf32>
      tpu.vector_store %arg6[%c0_35, %c0_36], %48 {strides = array<i32>} : memref<8x1xf32, #tpu.memory_space<vmem>>, vector<8x1xf32>,
      %cst_37 = arith.constant 0.000000e+00 : f32
      %50 = vector.broadcast %cst_37 : f32 to vector<8x1xf32>
      %c0_38 = arith.constant 0 : index
      %c0_39 = arith.constant 0 : index
      %51 = vector.load %arg7[%c0_38, %c0_39] : memref<8x1xf32, #tpu.memory_space<vmem>>, vector<8x1xf32>
      tpu.vector_store %arg7[%c0_38, %c0_39], %50 {strides = array<i32>} : memref<8x1xf32, #tpu.memory_space<vmem>>, vector<8x1xf32>,
    } else {
    }
    %c0 = arith.constant 0 : index
    %c0_1 = arith.constant 0 : index
    %3 = vector.load %arg2[%c0, %c0_1] : memref<8x256xf32, #tpu.memory_space<vmem>>, vector<8x256xf32>
    %c0_2 = arith.constant 0 : index
    %c0_3 = arith.constant 0 : index
    %4 = vector.load %arg3[%c0_2, %c0_3] : memref<8x256xf32, #tpu.memory_space<vmem>>, vector<8x256xf32>
    %5 = math.absf %3 : vector<8x256xf32>
    %cst = arith.constant 0.000000e+00 : f32
    %6 = vector.broadcast %cst : f32 to vector<8x256xf32>
    %7 = arith.subf %6, %5 : vector<8x256xf32>
    %8 = math.exp %7 : vector<8x256xf32>
    %cst_4 = arith.constant 1.000000e+00 : f32
    %9 = vector.broadcast %cst_4 : f32 to vector<8x256xf32>
    %10 = arith.addf %9, %8 : vector<8x256xf32>
    %cst_5 = arith.constant 1.000000e+00 : f32
    %11 = vector.broadcast %cst_5 : f32 to vector<8x256xf32>
    %12 = arith.divf %11, %10 : vector<8x256xf32>
    %cst_6 = arith.constant 0.000000e+00 : f32
    %13 = vector.broadcast %cst_6 : f32 to vector<8x256xf32>
    %14 = arith.cmpf oge, %3, %13 : vector<8x256xf32>
    %15 = arith.mulf %8, %12 : vector<8x256xf32>
    %16 = arith.select %14, %12, %15 : vector<8x256xi1>, vector<8x256xf32>
    %cst_7 = arith.constant 0.000000e+00 : f32
    %17 = vector.broadcast %cst_7 : f32 to vector<8x256xf32>
    %18 = arith.maximumf %3, %17 : vector<8x256xf32>
    %19 = arith.mulf %3, %4 : vector<8x256xf32>
    %20 = arith.subf %18, %19 : vector<8x256xf32>
    %21 = math.log1p %8 : vector<8x256xf32>
    %22 = arith.addf %20, %21 : vector<8x256xf32>
    %c0_8 = arith.constant 0 : index
    %c0_9 = arith.constant 0 : index
    %23 = vector.load %arg4[%c0_8, %c0_9] : memref<8x1xf32, #tpu.memory_space<vmem>>, vector<8x1xf32>
    %24 = arith.mulf %16, %4 : vector<8x256xf32>
    %cst_10 = arith.constant dense<0.000000e+00> : vector<8xf32>
    %25 = vector.multi_reduction <add>, %24, %cst_10 [1] : vector<8x256xf32> to vector<8xf32>
    %26 = vector.shape_cast %25 : vector<8xf32> to vector<8x1xf32>
    %27 = arith.addf %23, %26 : vector<8x1xf32>
    %c0_11 = arith.constant 0 : index
    %c0_12 = arith.constant 0 : index
    %28 = vector.load %arg4[%c0_11, %c0_12] : memref<8x1xf32, #tpu.memory_space<vmem>>, vector<8x1xf32>
    tpu.vector_store %arg4[%c0_11, %c0_12], %27 {strides = array<i32>} : memref<8x1xf32, #tpu.memory_space<vmem>>, vector<8x1xf32>,
    %c0_13 = arith.constant 0 : index
    %c0_14 = arith.constant 0 : index
    %29 = vector.load %arg5[%c0_13, %c0_14] : memref<8x1xf32, #tpu.memory_space<vmem>>, vector<8x1xf32>
    %cst_15 = arith.constant dense<0.000000e+00> : vector<8xf32>
    %30 = vector.multi_reduction <add>, %16, %cst_15 [1] : vector<8x256xf32> to vector<8xf32>
    %31 = vector.shape_cast %30 : vector<8xf32> to vector<8x1xf32>
    %32 = arith.addf %29, %31 : vector<8x1xf32>
    %c0_16 = arith.constant 0 : index
    %c0_17 = arith.constant 0 : index
    %33 = vector.load %arg5[%c0_16, %c0_17] : memref<8x1xf32, #tpu.memory_space<vmem>>, vector<8x1xf32>
    tpu.vector_store %arg5[%c0_16, %c0_17], %32 {strides = array<i32>} : memref<8x1xf32, #tpu.memory_space<vmem>>, vector<8x1xf32>,
    %c0_18 = arith.constant 0 : index
    %c0_19 = arith.constant 0 : index
    %34 = vector.load %arg6[%c0_18, %c0_19] : memref<8x1xf32, #tpu.memory_space<vmem>>, vector<8x1xf32>
    %cst_20 = arith.constant dense<0.000000e+00> : vector<8xf32>
    %35 = vector.multi_reduction <add>, %4, %cst_20 [1] : vector<8x256xf32> to vector<8xf32>
    %36 = vector.shape_cast %35 : vector<8xf32> to vector<8x1xf32>
    %37 = arith.addf %34, %36 : vector<8x1xf32>
    %c0_21 = arith.constant 0 : index
    %c0_22 = arith.constant 0 : index
    %38 = vector.load %arg6[%c0_21, %c0_22] : memref<8x1xf32, #tpu.memory_space<vmem>>, vector<8x1xf32>
    tpu.vector_store %arg6[%c0_21, %c0_22], %37 {strides = array<i32>} : memref<8x1xf32, #tpu.memory_space<vmem>>, vector<8x1xf32>,
    %c0_23 = arith.constant 0 : index
    %c0_24 = arith.constant 0 : index
    %39 = vector.load %arg7[%c0_23, %c0_24] : memref<8x1xf32, #tpu.memory_space<vmem>>, vector<8x1xf32>
    %cst_25 = arith.constant dense<0.000000e+00> : vector<8xf32>
    %40 = vector.multi_reduction <add>, %22, %cst_25 [1] : vector<8x256xf32> to vector<8xf32>
    %41 = vector.shape_cast %40 : vector<8xf32> to vector<8x1xf32>
    %42 = arith.addf %39, %41 : vector<8x1xf32>
    %c0_26 = arith.constant 0 : index
    %c0_27 = arith.constant 0 : index
    %43 = vector.load %arg7[%c0_26, %c0_27] : memref<8x1xf32, #tpu.memory_space<vmem>>, vector<8x1xf32>
    tpu.vector_store %arg7[%c0_26, %c0_27], %42 {strides = array<i32>} : memref<8x1xf32, #tpu.memory_space<vmem>>, vector<8x1xf32>,
    return
  }
  func.func @transform_0(%arg0: i32, %arg1: i32) -> (i32, i32) {
    %c0_i32 = arith.constant 0 : i32
    return %arg0, %arg1 : i32, i32
  }
  func.func @transform_1(%arg0: i32, %arg1: i32) -> (i32, i32) {
    %c0_i32 = arith.constant 0 : i32
    return %arg0, %arg1 : i32, i32
  }
  func.func @transform_2(%arg0: i32, %arg1: i32) -> (i32, i32) {
    %c0_i32 = arith.constant 0 : i32
    %c0_i32_0 = arith.constant 0 : i32
    return %arg0, %c0_i32 : i32, i32
  }
  func.func @transform_3(%arg0: i32, %arg1: i32) -> (i32, i32) {
    %c0_i32 = arith.constant 0 : i32
    %c0_i32_0 = arith.constant 0 : i32
    return %arg0, %c0_i32 : i32, i32
  }
  func.func @transform_4(%arg0: i32, %arg1: i32) -> (i32, i32) {
    %c0_i32 = arith.constant 0 : i32
    %c0_i32_0 = arith.constant 0 : i32
    return %arg0, %c0_i32 : i32, i32
  }
  func.func @transform_5(%arg0: i32, %arg1: i32) -> (i32, i32) {
    %c0_i32 = arith.constant 0 : i32
    %c0_i32_0 = arith.constant 0 : i32
    return %arg0, %c0_i32 : i32, i32
  }
}

</mosaic_0001>

<llo_original>
// kernel: dice_loss.1
$region0: #{dice_loss.1}
  #allocation0 [shape = 'u32[]', space=smem, size = 0x4, offset = 0x4, fixed_abs, tag = 'smem constant byte address 0x4 - core index']
  #allocation1 [shape = 'u32[72,128]{1,0:T(1,128)}', space=vmem, size = 0x9000, scoped, tag = 'internal scratch']
  %s0 = inlined_call_operand.vmem [shape: f32[8,256], index: 0, kind: input, shape index: {}]
  %s1 = inlined_call_operand.vmem [shape: f32[8,256], index: 1, kind: input, shape index: {}]
  %s2 = inlined_call_operand.vmem [shape: f32[8,1], index: 2, kind: output, shape index: {0}]
  %s3 = inlined_call_operand.vmem [shape: f32[8,1], index: 3, kind: output, shape index: {1}]
  %s4 = inlined_call_operand.vmem [shape: f32[8,1], index: 4, kind: output, shape index: {2}]
  %s5 = inlined_call_operand.vmem [shape: f32[8,1], index: 5, kind: output, shape index: {3}]
  %6 = xla_tuple %s2, %s3, %s4, %s5
  %s7 = sld [smem:[#allocation0]]
  $region46: #{dice_loss.1} parent=0
    _
  %s9 = ssub.s32 1, %s7
  %s10 = scalar_select 0, %s9, %s7
  // Predicated region
  $region2: #{dice_loss.1} parent=0 // pred_check
    _
  $region3: #{dice_loss.1} parent=0 // pred_check_branch
    %12 = sbr.rel (0) target = $region5
  $region4: #{dice_loss.1} parent=0 // pred_region
    _
  $region5: #{dice_loss.1} parent=0 // pred_fallthru
    _
  // Predicated region
  $region6: #{dice_loss.1} parent=0 // pred_check
    _
  $region7: #{dice_loss.1} parent=0 // pred_check_branch
    %14 = sbr.rel (0) target = $region9
  $region8: #{dice_loss.1} parent=0 // pred_region
    _
  $region9: #{dice_loss.1} parent=0 // pred_fallthru
    _
  %p15 = scmp.eq.s32.totalorder 0, 0
  // Predicated region
  $region10: #{dice_loss.1} parent=0 // pred_check
    %p16 = pneg %p15
  $region11: #{dice_loss.1} parent=0 // pred_check_branch
    %18 = sbr.rel (%p16) target = $region13
  $region12: #{dice_loss.1} parent=0 // pred_region
    %vm19 = vcmask 7168
    %20 = vst.msk [vmem:[%s2] sm:$0xff] %vm19, 0.0
    %21 = vst.msk [vmem:[%s3] sm:$0xff] %vm19, 0.0
    %22 = vst.msk [vmem:[%s4] sm:$0xff] %vm19, 0.0
    %23 = vst.msk [vmem:[%s5] sm:$0xff] %vm19, 0.0
  $region13: #{dice_loss.1} parent=0 // pred_fallthru
    _
  %v24 = vld [vmem:[%s0] sm:$0xff]
  %v25 = vld [vmem:[%s0 + $0x8] sm:$0xff]
  %v26 = vld [vmem:[%s1] sm:$0xff]
  %v27 = vld [vmem:[%s1 + $0x8] sm:$0xff]
  %v28 = vand.u32 2147483647, %v24
  %v29 = vand.u32 2147483647, %v25
  %v30 = vsub.f32 0.0, %v28
  %v31 = vsub.f32 0.0, %v29
  %v32 = vmul.f32 %v30, 1.442695
  %v33 = vpow.pop %v32
  %v34 = vmul.f32 %v31, 1.442695
  %v35 = vpow.pop %v34
  %v36 = vadd.f32 %v33, 1.0
  %v37 = vadd.f32 %v35, 1.0
  %v38 = vrcp.pop %v36
  %v39 = vmul.f32 %v36, %v38
  %v40 = vsub.f32 1.0, %v39
  %v41 = vmul.f32 %v38, %v40
  %v42 = vadd.f32 %v38, %v41
  %vm43 = vweird.f32 %v36
  %vm44 = vweird.f32 %v38
  %vm45 = vmor %vm43, %vm44
  %v46 = vsel %vm45, %v38, %v42
  %v47 = vand.u32 2147483647, %v36
  %vm48 = vcmp.eq.f32.partialorder %v47, 8.507059e+37
  %v49 = vand.u32 %v36, 2147483648
  %v50 = vor.u32 1.1754944e-38, %v49
  %v51 = vsel %vm48, %v50, %v46
  %v52 = vmul.f32 1.0, %v51
  %v53 = vrcp.pop %v37
  %v54 = vmul.f32 %v37, %v53
  %v55 = vsub.f32 1.0, %v54
  %v56 = vmul.f32 %v53, %v55
  %v57 = vadd.f32 %v53, %v56
  %vm58 = vweird.f32 %v37
  %vm59 = vweird.f32 %v53
  %vm60 = vmor %vm58, %vm59
  %v61 = vsel %vm60, %v53, %v57
  %v62 = vand.u32 2147483647, %v37
  %vm63 = vcmp.eq.f32.partialorder %v62, 8.507059e+37
  %v64 = vand.u32 %v37, 2147483648
  %v65 = vor.u32 1.1754944e-38, %v64
  %v66 = vsel %vm63, %v65, %v61
  %v67 = vmul.f32 1.0, %v66
  %vm68 = vcmp.ge.f32.partialorder %v24, 0.0
  %vm69 = vcmp.ge.f32.partialorder %v25, 0.0
  %v70 = vmul.f32 %v33, %v52
  %v71 = vmul.f32 %v35, %v67
  %v72 = vsel %vm68, %v52, %v70
  %v73 = vsel %vm69, %v67, %v71
  %v74 = vmax.f32 %v24, 0.0
  %v75 = vmax.f32 %v25, 0.0
  %v76 = vmul.f32 %v24, %v26
  %v77 = vmul.f32 %v25, %v27
  %v78 = vsub.f32 %v74, %v76
  %v79 = vsub.f32 %v75, %v77
  %v80 = vadd.f32 %v33, 1.0
  %v81 = vlog2.pop %v80
  %v82 = vmul.f32 %v81, 0.6931472
  %v83 = vmul.f32 -0.5, %v33
  %v84 = vadd.f32 %v83, 1.0
  %v85 = vmul.f32 %v84, %v33
  %v86 = vand.u32 2147483647, %v33
  %vm87 = vcmp.lt.f32.partialorder %v86, 0.0004427343
  %v88 = vsel %vm87, %v85, %v82
  %v89 = vadd.f32 %v35, 1.0
  %v90 = vlog2.pop %v89
  %v91 = vmul.f32 %v90, 0.6931472
  %v92 = vmul.f32 -0.5, %v35
  %v93 = vadd.f32 %v92, 1.0
  %v94 = vmul.f32 %v93, %v35
  %v95 = vand.u32 2147483647, %v35
  %vm96 = vcmp.lt.f32.partialorder %v95, 0.0004427343
  %v97 = vsel %vm96, %v94, %v91
  %v98 = vadd.f32 %v78, %v88
  %v99 = vadd.f32 %v79, %v97
  %v100 = vld [vmem:[%s2] sm:$0xff]
  %v101 = vmul.f32 %v72, %v26
  %v102 = vmul.f32 %v73, %v27
  %v103 = vadd.f32 %v101, %v102
  %104 = vadd.xlane.f32.xlu0 %v103
  %v105 = vpop.xlane.xlu0 %104
  %v106 = vadd.f32 %v100, %v105
  %vm107 = vcmask 7168
  %108 = vst.msk [vmem:[%s2] sm:$0xff] %vm107, %v106
  %v109 = vld [vmem:[%s3] sm:$0xff]
  %v110 = vadd.f32 %v72, %v73
  %111 = vadd.xlane.f32.xlu0 %v110
  %v112 = vpop.xlane.xlu0 %111
  %v113 = vadd.f32 %v109, %v112
  %114 = vst.msk [vmem:[%s3] sm:$0xff] %vm107, %v113
  %v115 = vld [vmem:[%s4] sm:$0xff]
  %v116 = vadd.f32 %v26, %v27
  %117 = vadd.xlane.f32.xlu0 %v116
  %v118 = vpop.xlane.xlu0 %117
  %v119 = vadd.f32 %v115, %v118
  %120 = vst.msk [vmem:[%s4] sm:$0xff] %vm107, %v119
  %v121 = vld [vmem:[%s5] sm:$0xff]
  %v122 = vadd.f32 %v98, %v99
  %123 = vadd.xlane.f32.xlu0 %v122
  %v124 = vpop.xlane.xlu0 %123
  %v125 = vadd.f32 %v121, %v124
  %126 = vst.msk [vmem:[%s5] sm:$0xff] %vm107, %v125
  // Predicated region
  $region14: #{dice_loss.1} parent=0 // pred_check
    _
  $region15: #{dice_loss.1} parent=0 // pred_check_branch
    %128 = sbr.rel (0) target = $region17
  $region16: #{dice_loss.1} parent=0 // pred_region
    _
  $region17: #{dice_loss.1} parent=0 // pred_fallthru
    _
  // Predicated region
  $region18: #{dice_loss.1} parent=0 // pred_check
    _
  $region19: #{dice_loss.1} parent=0 // pred_check_branch
    %130 = sbr.rel (0) target = $region21
  $region20: #{dice_loss.1} parent=0 // pred_region
    _
  $region21: #{dice_loss.1} parent=0 // pred_fallthru
    _
  // Predicated region
  $region22: #{dice_loss.1} parent=0 // pred_check
    _
  $region23: #{dice_loss.1} parent=0 // pred_check_branch
    %132 = sbr.rel (0) target = $region25
  $region24: #{dice_loss.1} parent=0 // pred_region
    _
  $region25: #{dice_loss.1} parent=0 // pred_fallthru
    _
  // Predicated region
  $region26: #{dice_loss.1} parent=0 // pred_check
    _
  $region27: #{dice_loss.1} parent=0 // pred_check_branch
    %134 = sbr.rel (0) target = $region29
  $region28: #{dice_loss.1} parent=0 // pred_region
    _
  $region29: #{dice_loss.1} parent=0 // pred_fallthru
    _
  // Predicated region
  $region30: #{dice_loss.1} parent=0 // pred_check
    _
  $region31: #{dice_loss.1} parent=0 // pred_check_branch
    %136 = sbr.rel (0) target = $region33
  $region32: #{dice_loss.1} parent=0 // pred_region
    _
  $region33: #{dice_loss.1} parent=0 // pred_fallthru
    _
  // Predicated region
  $region34: #{dice_loss.1} parent=0 // pred_check
    _
  $region35: #{dice_loss.1} parent=0 // pred_check_branch
    %138 = sbr.rel (0) target = $region37
  $region36: #{dice_loss.1} parent=0 // pred_region
    _
  $region37: #{dice_loss.1} parent=0 // pred_fallthru
    _
  // Predicated region
  $region38: #{dice_loss.1} parent=0 // pred_check
    _
  $region39: #{dice_loss.1} parent=0 // pred_check_branch
    %140 = sbr.rel (0) target = $region41
  $region40: #{dice_loss.1} parent=0 // pred_region
    _
  $region41: #{dice_loss.1} parent=0 // pred_fallthru
    _
  // Predicated region
  $region42: #{dice_loss.1} parent=0 // pred_check
    _
  $region43: #{dice_loss.1} parent=0 // pred_check_branch
    %142 = sbr.rel (0) target = $region45
  $region44: #{dice_loss.1} parent=0 // pred_region
    _
  $region45: #{dice_loss.1} parent=0 // pred_fallthru
    _

</llo_original>
